<compile_context>
chip_gen: v6e
topology: v6e:2x2x1
jax: 0.10.0
libtpu: 0.0.40
codegen_flags: <defaults>
</compile_context>

<pallas_src>
import jax
import jax.numpy as jnp
from jax.experimental import pallas as pl
from jax.experimental.pallas import tpu as pltpu


def _copy_kernel(x_ref, o_ref):
    # Pure streaming identity copy. The "lambd(x)" side effect is handled in
    # the JAX wrapper (host side), matching the PyTorch module's semantics.
    o_ref[...] = x_ref[...]


def _hw_params():
    """Generation-aware tile / VMEM budget."""
    vmem_bytes = None
    try:
        vmem_bytes = int(pltpu.get_tpu_info().vmem_capacity_bytes)
    except Exception:
        vmem_bytes = None
    if vmem_bytes is None:
        try:
            kind = jax.devices()[0].device_kind.lower()
        except Exception:
            kind = ""
        vmem_bytes = (64 if "v7" in kind else 128) * 1024 * 1024
    if vmem_bytes <= 64 * 1024 * 1024:
        # v7x-class: 64 MiB VMEM per TC, 2 TCs/chip.
        return {
            "tile_bytes": 4 * 1024 * 1024,     # in+out double-buffered = 16 MiB
            "vmem_limit": 32 * 1024 * 1024,
            "min_grid_steps": 2,               # let ("parallel",) use both TCs
        }
    # v5e / v6e: 128 MiB VMEM, 1 TC/chip.
    return {
        "tile_bytes": 8 * 1024 * 1024,         # in+out double-buffered = 32 MiB
        "vmem_limit": 64 * 1024 * 1024,        # v5e scoped default is only 16 MiB
        "min_grid_steps": 1,
    }


def _sublane_pack(itemsize):
    # Sub-32-bit dtypes pack along sublanes: keep row tiles a multiple of the
    # packed sublane count so loads/stores stay full-width.
    return {4: 8, 2: 16, 1: 32}.get(int(itemsize), 8)


def _choose_2d_layout(total):
    """Lane-dense (rows, cols) view of the flattened tensor, or None."""
    for cols in (32768, 16384, 8192, 4096, 2048, 1024, 512, 256, 128):
        if total % cols == 0:
            rows = total // cols
            if rows >= 8 or cols >= 1024:
                return rows, cols
    return None  # fall back to the 1-D masked-tail path


def _choose_tile_rows(rows, cols, itemsize, hw):
    pack = _sublane_pack(itemsize)
    bytes_per_row = max(1, cols * itemsize)
    target_rows = max(1, hw["tile_bytes"] // bytes_per_row)
    tile = min(rows, target_rows)

    if hw["min_grid_steps"] > 1 and rows > 1:
        # Prefer >=4 (else >=2) grid steps so the two v7x TensorCores both
        # issue DMA, as long as per-tile size stays >= ~512 KiB.
        for parts in (4, 2):
            want = -(-rows // parts)                       # cdiv
            want = max(pack, ((want + pack - 1) // pack) * pack)
            if want * bytes_per_row >= 512 * 1024:
                tile = min(tile, want)
                break

    if tile >= rows:
        return rows                                        # full extent: legal
    tile = max(pack, (tile // pack) * pack)                # sublane-aligned
    return min(tile, rows)


def _pallas_copy(x_view, block_shape, grid, hw, donate):
    if x_view.ndim == 2:
        spec = pl.BlockSpec(block_shape, lambda i: (i, 0))
    else:
        spec = pl.BlockSpec(block_shape, lambda i: (i,))
    kwargs = {}
    if donate:
        # Only alias when the caller actually donates the input (e.g. via
        # jax.jit(donate_argnums=0)); otherwise XLA inserts a defensive copy.
        kwargs["input_output_aliases"] = {0: 0}
    return pl.pallas_call(
        _copy_kernel,
        out_shape=jax.ShapeDtypeStruct(x_view.shape, x_view.dtype),
        grid=grid,
        in_specs=[spec],
        out_specs=spec,
        compiler_params=pltpu.CompilerParams(
            dimension_semantics=("parallel",),
            vmem_limit_bytes=hw["vmem_limit"],
        ),
        **kwargs,
    )(x_view)


def debug_identity(x, lambd=None, *, materialize_copy=False, donate=False):
    """Pallas equivalent of Debug(lambd)(x): side effect + identity return.

    Default path launches NO kernel (pure identity, matching PyTorch).
    Set materialize_copy=True to force a fresh HBM copy via a Pallas
    streaming-copy kernel; set donate=True only when the input buffer is
    actually donated (jax.jit(donate_argnums=0)).
    """
    if lambd is not None:
        # TODO(synk): arbitrary Python `lambd` cannot run on-device inside the
        # kernel; it is executed host-side here (as the PyTorch module does).
        lambd(x)

    if not materialize_copy:
        return x                        # fast path: zero HBM traffic

    if x.size == 0:
        return x

    orig_shape = x.shape
    dtype = x.dtype
    itemsize = jnp.zeros((), dtype).dtype.itemsize
    total = int(x.size)
    hw = _hw_params()

    layout = _choose_2d_layout(total)
    if layout is not None:
        rows, cols = layout
        x2 = x.reshape(rows, cols)      # layout glue only, no data reorder
        tile_rows = _choose_tile_rows(rows, cols, itemsize, hw)
        grid = (pl.cdiv(rows, tile_rows),)   # ragged last block is masked
        out = _pallas_copy(x2, (tile_rows, cols), grid, hw, donate)
    else:
        # Flattened size not a multiple of 128: flat 1-D stream, tiles are
        # multiples of 1024 elems (8x128); ragged last block is masked.
        x1 = x.reshape(total)
        tile_elems = max(1024, (hw["tile_bytes"] // itemsize // 1024) * 1024)
        if tile_elems >= total:
            tile_elems = total          # full extent: single legal block
        grid = (pl.cdiv(total, tile_elems),)
        out = _pallas_copy(x1, (tile_elems,), grid, hw, donate)

    return out.reshape(orig_shape)


if __name__ == "__main__":
    # Small NCHW-style input, matching the PyTorch convention.
    shape = (2, 4, 16, 16)
    x = jax.random.normal(jax.random.PRNGKey(0), shape, dtype=jnp.float32)

    seen = []
    # Default path: pure identity, no kernel launch (matches PyTorch Debug).
    y_fast = debug_identity(x, lambd=lambda t: seen.append(t.shape))
    assert y_fast is x
    assert len(seen) == 1 and seen[0] == shape          # lambd ran exactly once

    # Explicit materialized copy: exercises the Pallas streaming-copy kernel.
    y_copy = jax.block_until_ready(debug_identity(x, materialize_copy=True))
    assert y_copy.shape == shape and y_copy.dtype == x.dtype
    assert bool(jnp.all(y_copy == x))

    # Awkward shape (flattened size 105, not a multiple of 128): 1-D fallback.
    z = jax.random.normal(jax.random.PRNGKey(1), (3, 5, 7), dtype=jnp.float32)
    z_copy = jax.block_until_ready(debug_identity(z, materialize_copy=True))
    assert z_copy.shape == z.shape and bool(jnp.all(z_copy == z))

    print("KERNEL_OK")
</pallas_src>

<mosaic_0001>
module attributes {stable_mosaic.version = 11 : i64} {
  func.func @_copy_kernel(%arg0: i32, %arg1: memref<1x2048xf32, #tpu.memory_space<vmem>>, %arg2: memref<1x2048xf32, #tpu.memory_space<vmem>>) attributes {dimension_semantics = [#tpu.dimension_semantics<parallel>], iteration_bounds = array<i64: 1>, scalar_prefetch = 0 : i64, scratch_operands = 0 : i64, tpu.core_type = #tpu.core_type<tc>, window_params = [{transform_indices = @transform_0, window_bounds = array<i64: 1, 2048>}, {transform_indices = @transform_1, window_bounds = array<i64: 1, 2048>}]} {
    %c0 = arith.constant 0 : index
    %c0_0 = arith.constant 0 : index
    %0 = vector.load %arg1[%c0, %c0_0] : memref<1x2048xf32, #tpu.memory_space<vmem>>, vector<1x2048xf32>
    %c0_1 = arith.constant 0 : index
    %c0_2 = arith.constant 0 : index
    %1 = vector.load %arg2[%c0_1, %c0_2] : memref<1x2048xf32, #tpu.memory_space<vmem>>, vector<1x2048xf32>
    tpu.vector_store %arg2[%c0_1, %c0_2], %0 {strides = array<i32>} : memref<1x2048xf32, #tpu.memory_space<vmem>>, vector<1x2048xf32>,
    return
  }
  func.func @transform_0(%arg0: i32) -> (i32, i32) {
    %c0_i32 = arith.constant 0 : i32
    %c0_i32_0 = arith.constant 0 : i32
    return %arg0, %c0_i32 : i32, i32
  }
  func.func @transform_1(%arg0: i32) -> (i32, i32) {
    %c0_i32 = arith.constant 0 : i32
    %c0_i32_0 = arith.constant 0 : i32
    return %arg0, %c0_i32 : i32, i32
  }
}

</mosaic_0001>

<llo_original>
// kernel: tpu_custom_call.1
$region0: #{tpu_custom_call.1}
  #allocation0 [shape = 'u32[]', space=smem, size = 0x4, offset = 0x4, fixed_abs, tag = 'smem constant byte address 0x4 - core index']
  #allocation1 [shape = 'u32[144,128]{1,0:T(1,128)}', space=vmem, size = 0x12000, scoped, tag = 'internal scratch']
  %s0 = inlined_call_operand.hbm [shape: f32[1,2048], index: 0, kind: input, shape index: {}]
  %s1 = inlined_call_operand.hbm [shape: f32[1,2048], index: 1, kind: output, shape index: {}]
  %s2 = sld [smem:[#allocation0]]
  $region18: #{tpu_custom_call.1} parent=0
    _
  %s4 = ssub.s32 1, %s2
  %s5 = scalar_select 0, %s4, %s2
  $region1: #{tpu_custom_call.1} parent=0
    #allocation2 [shape = 'u8[8192]{0}', space=vmem, size = 0x2000, scoped, tag = 'input window, operand 0, single buffered']
    #allocation3 [shape = 's32[1]{0}', space=sflag, size = 0x4, scoped, tag = 'scoped memory for tpu_custom_call.1']
    #allocation4 [shape = 's32[1]{0}', space=sflag, size = 0x4, scoped, tag = 'scoped memory for tpu_custom_call.1']
    #allocation5 [shape = 'u8[8192]{0}', space=vmem, size = 0x2000, scoped, tag = 'output window, operand 0, single buffered']
    %6 = vsyncpa [#allocation3], 0
    %7 = vsyncpa [#allocation4], 0
    // Predicated region
    $region2: #{tpu_custom_call.1} parent=1 // pred_check
      _
    $region3: #{tpu_custom_call.1} parent=1 // pred_check_branch
      %9 = sbr.rel (0) target = $region5
    $region4: #{tpu_custom_call.1} parent=1 // pred_region
      %s11 = ssub.s32 256, 256
      %12 = vsyncadd [#allocation3], %s11
      %s14 = sshll.u32 [#allocation2], 4
      %s15 = int_to_ptr.vmem [resolvable:$true] %s14
      %17 = dma.hbm_to_vmem [thread:$0]  %s0, 256, %s15, [#allocation3]
    $region5: #{tpu_custom_call.1} parent=1 // pred_fallthru
      _
    // Predicated region
    $region6: #{tpu_custom_call.1} parent=1 // pred_check
      _
    $region7: #{tpu_custom_call.1} parent=1 // pred_check_branch
      %19 = sbr.rel (0) target = $region9
    $region8: #{tpu_custom_call.1} parent=1 // pred_region
      %20 = dma.done [#allocation3], 256
    $region9: #{tpu_custom_call.1} parent=1 // pred_fallthru
      _
    %v21 = vld [vmem:[#allocation2] sm:$0xff]
    %v22 = vld [vmem:[#allocation2 + $0x8] sm:$0xff]
    %23 = vst [vmem:[#allocation5] sm:$0xff] %v21
    %24 = vst [vmem:[#allocation5 + $0x8] sm:$0xff] %v22
    // Predicated region
    $region10: #{tpu_custom_call.1} parent=1 // pred_check
      _
    $region11: #{tpu_custom_call.1} parent=1 // pred_check_branch
      %26 = sbr.rel (0) target = $region13
    $region12: #{tpu_custom_call.1} parent=1 // pred_region
      %s28 = ssub.s32 256, 256
      %29 = vsyncadd [#allocation4], %s28
      %s31 = sshll.u32 [#allocation5], 4
      %s32 = int_to_ptr.vmem [resolvable:$true] %s31
      %34 = dma.vmem_to_hbm [thread:$0]  %s32, 256, %s1, [#allocation4]
    $region13: #{tpu_custom_call.1} parent=1 // pred_fallthru
      _
    // Predicated region
    $region14: #{tpu_custom_call.1} parent=1 // pred_check
      _
    $region15: #{tpu_custom_call.1} parent=1 // pred_check_branch
      %36 = sbr.rel (0) target = $region17
    $region16: #{tpu_custom_call.1} parent=1 // pred_region
      %37 = dma.done [#allocation4], 256
    $region17: #{tpu_custom_call.1} parent=1 // pred_fallthru
      _
    %38 = vsyncpa [#allocation3], 1
    %39 = vsyncpa [#allocation4], 1

</llo_original>
